<compile_context>
chip_gen: v6e
topology: v6e:2x2x1
jax: 0.10.0
libtpu: 0.0.40
codegen_flags: <defaults>
</compile_context>

<pallas_src>
import math
import functools

import jax
import jax.numpy as jnp
from jax import lax
from jax.experimental import pallas as pl
from jax.experimental.pallas import tpu as pltpu


def _round_up(x, m):
    return ((x + m - 1) // m) * m


def _r128(x):
    return _round_up(max(int(x), 1), 128)


def _r8(x):
    return _round_up(max(int(x), 1), 8)


def make_positional_encoding(max_len, d_model):
    """Standard sinusoidal PE table, shape (max_len, d_model) (PyTorch-tutorial PositionalEncoding)."""
    position = jnp.arange(max_len, dtype=jnp.float32)[:, None]
    div_term = jnp.exp(jnp.arange(0, d_model, 2, dtype=jnp.float32)
                       * (-math.log(10000.0) / d_model))
    pe = jnp.zeros((max_len, d_model), dtype=jnp.float32)
    pe = pe.at[:, 0::2].set(jnp.sin(position * div_term))
    pe = pe.at[:, 1::2].set(jnp.cos(position * div_term))
    return pe


def _vmem_capacity_bytes():
    """Per-core VMEM capacity (v5e/v6e: 128 MiB, v7x: 64 MiB).  Conservative fallback if unknown."""
    try:
        cap = int(pltpu.get_tpu_info().vmem_capacity_bytes)
        if cap > 0:
            return cap
    except Exception:
        pass
    return 64 * 2**20


# ------------------------------------------------------------------------------------------------
# Path 1 (tiny vocab): gather-as-matmul on the MXU; table resident in VMEM; lane-dense output slab.
# ------------------------------------------------------------------------------------------------
def _onehot_kernel(tok_ref, emb_ref, pe_ref, out_ref, *, bsz, vocab_p, emb_e):
    # tok_ref: (tile_s, B)    int32 token ids for this sequence tile
    # emb_ref: (Vp, E)        f32   table pre-scaled by sqrt(E), rows padded to a 128-multiple;
    #                               constant block index -> streamed into VMEM once for the grid
    # pe_ref : (tile_s, E)    f32   positional-encoding rows for this tile
    # out_ref: (tile_s, B*E)  f32   lane-dense slab; row s = [emb(s,0)+pe(s) | emb(s,1)+pe(s) | ...]
    tile_s = tok_ref.shape[0]
    emb = emb_ref[...]
    pe = pe_ref[...]
    iota_v = lax.broadcasted_iota(jnp.int32, (tile_s, vocab_p), 1)
    for b in range(bsz):                               # static unroll; chunk stored directly
        onehot = (iota_v == tok_ref[:, b:b + 1]).astype(emb.dtype)
        # NOTE: a bf16 one-hot/table would hit the fast MXU mode on v6e/v7x but rounds the table;
        # kept f32 so results stay bit-identical to the reference.
        out_ref[:, b * emb_e:(b + 1) * emb_e] = (
            jnp.dot(onehot, emb, preferred_element_type=jnp.float32) + pe)


# ------------------------------------------------------------------------------------------------
# Paths 2/3 (row gather): wave-based double-buffered DMA gather.  The embedding table ref is either
# a raw HBM ref (memory_space=pl.ANY) or a VMEM-resident block (constant block index) -- the kernel
# body is identical for both.
# ------------------------------------------------------------------------------------------------
def _gather_kernel(tok_ref, pe_ref, emb_ref, out_ref, gbuf, sem, *,
                   scale, bsz, emb_e, wave_s, num_waves, seq_len):
    # tok_ref: (chunk_rows,)      int32 in SMEM (scalar prefetch); flat row-major (s, b) ids
    # pe_ref : (tile_s, E)        f32 VMEM
    # emb_ref: (V, E)             f32 in HBM (pl.ANY) or VMEM (resident)
    # out_ref: (tile_s, B*E)      f32 VMEM, lane-dense
    # gbuf   : (2, wave_s, B*E)   f32 VMEM landing buffers (one per in-flight wave)
    # sem    : (2,)               DMA semaphores, one per slot
    tile_row0 = pl.program_id(0) * (wave_s * num_waves)   # first (chunk-local) sequence row

    def issue_wave(w, slot):
        @pl.loop(0, wave_s)
        def _issue(s):
            flat0 = (tile_row0 + w * wave_s + s) * bsz
            for b in range(bsz):                      # static unroll -> static lane offset, no div/mod
                pltpu.make_async_copy(
                    emb_ref.at[tok_ref[flat0 + b]],
                    gbuf.at[slot, s, pl.ds(b * emb_e, emb_e)],
                    sem.at[slot],
                ).start()

    def wave_valid(w):                                # waves made entirely of padding rows are skipped
        return tile_row0 + w * wave_s < seq_len

    issue_wave(0, 0)                                  # wave 0 of a live tile always has valid rows
    for w in range(num_waves):                        # static unroll (num_waves is small)
        slot = w & 1

        if w + 1 < num_waves:
            @pl.when(wave_valid(w + 1))               # prefetch the next wave into the other slot
            def _prefetch(w=w):
                issue_wave(w + 1, (w + 1) & 1)

        @pl.when(wave_valid(w))
        def _consume(w=w, slot=slot):
            # One wait retires the whole wave: the descriptor's byte count (wave_s * B*E f32) equals
            # the sum of the wave's per-row copies (wave_s*B rows of E f32) by construction.
            pltpu.make_async_copy(gbuf.at[slot], gbuf.at[slot], sem.at[slot]).wait()
            r0 = w * wave_s
            pe = pe_ref[r0:r0 + wave_s, :]
            for b in range(bsz):                      # fused scale + PE add; lane-aligned if E%128==0
                c0 = b * emb_e
                out_ref[r0:r0 + wave_s, c0:c0 + emb_e] = (
                    gbuf[slot, :, c0:c0 + emb_e] * scale + pe)


# ------------------------------------------------------------------------------------------------
# Wrappers
# ------------------------------------------------------------------------------------------------
def _encoder_onehot(tokens, emb_f32, pe_f32, scale, tile_s, budget):
    S, B = tokens.shape
    V, E = emb_f32.shape
    vocab_p = _r128(V)                                # full 128-wide MXU contraction tiles (v5e)
    # Fold sqrt(E) into the tiny table once (V*E mul) instead of an S*B*E mul every grid step.
    emb_scaled = jnp.pad(emb_f32 * scale, ((0, vocab_p - V), (0, 0)))

    def vmem_est(ts):
        return 4 * (2 * vocab_p * _r128(E)            # resident table (assume double-buffered)
                    + 2 * ts * 128                    # token block (lane-padded)
                    + 2 * ts * _r128(E)               # PE block
                    + 2 * ts * _r128(B * E)           # output slab (double-buffered)
                    + 3 * ts * vocab_p)               # iota / one-hot / matmul temporaries

    tile_s = max(8, min(_round_up(int(tile_s), 8), _r8(S)))
    while vmem_est(tile_s) > budget and tile_s > 8:
        tile_s = max(8, _round_up(tile_s // 2, 8))
    s_pad = _round_up(S, tile_s)
    # v7x has two TensorCores; give the "parallel" grid >= 2 programs when S allows it.
    if s_pad // tile_s < 2 and tile_s > 8 and S > 8:
        tile_s = max(8, _round_up(-(-S // 2), 8))
        s_pad = _round_up(S, tile_s)
    grid = (s_pad // tile_s,)

    tok_pad = jnp.pad(tokens, ((0, s_pad - S), (0, 0)))
    pe_pad = jnp.pad(pe_f32, ((0, s_pad - S), (0, 0)))

    est = vmem_est(tile_s)
    vmem_limit = int(min(budget * 5 // 4, max(32 * 2**20, 2 * est)))

    out = pl.pallas_call(
        functools.partial(_onehot_kernel, bsz=B, vocab_p=vocab_p, emb_e=E),
        out_shape=jax.ShapeDtypeStruct((s_pad, B * E), jnp.float32),
        grid=grid,
        in_specs=[
            pl.BlockSpec((tile_s, B), lambda i: (i, 0)),       # token ids (small block)
            pl.BlockSpec((vocab_p, E), lambda i: (0, 0)),      # full table, constant index
            pl.BlockSpec((tile_s, E), lambda i: (i, 0)),       # PE rows, read in place
        ],
        out_specs=pl.BlockSpec((tile_s, B * E), lambda i: (i, 0)),
        compiler_params=pltpu.CompilerParams(
            dimension_semantics=("parallel",),
            vmem_limit_bytes=vmem_limit),
    )(tok_pad, emb_scaled, pe_pad)
    return out[:S].reshape(S, B, E)


def _encoder_gather(tokens, emb_f32, pe_f32, scale, tile_s, wave_s, budget, resident):
    S, B = tokens.shape
    V, E = emb_f32.shape

    # Wave size in sequence rows; keep wave_s * B (in-flight DMAs) modest when B is large.
    wave_s = max(8, _round_up(int(wave_s), 8))
    wave_s = min(wave_s, max(8, _round_up(256 // max(B, 1), 8)))

    table_cost = 2 * 4 * _r8(V) * _r128(E) if resident else 0

    def vmem_est(ts, ws):
        return (table_cost
                + 4 * (2 * ts * _r128(B * E)          # output slab (double-buffered)
                       + 2 * ts * _r128(E)            # PE block (double-buffered)
                       + 2 * ws * _r128(B * E)))      # two wave landing buffers

    # Keep tiles big (small tiles pay ~0.35us/step fixed overhead); shrink only for VMEM fit.
    tile_s = max(wave_s, _round_up(int(tile_s), wave_s))
    tile_s = min(tile_s, _round_up(S, wave_s))
    while vmem_est(tile_s, wave_s) > budget and tile_s > wave_s:
        tile_s -= wave_s
    if vmem_est(tile_s, wave_s) > budget and wave_s > 8:
        wave_s = 8
        tile_s = max(wave_s, min(tile_s, _round_up(S, wave_s)))
        while vmem_est(tile_s, wave_s) > budget and tile_s > wave_s:
            tile_s -= wave_s

    s_pad = _round_up(S, tile_s)
    # v7x has two TensorCores; give the "parallel" grid >= 2 programs when S allows it.
    if s_pad // tile_s < 2 and tile_s > wave_s and S > wave_s:
        tile_s = max(wave_s, _round_up(-(-S // 2), wave_s))
        s_pad = _round_up(S, tile_s)
    num_waves = tile_s // wave_s

    # Scalar-prefetched ids live in SMEM (1-D arrays pad to a power-of-two byte size): chunk the
    # sequence across pallas_calls so one call never prefetches more than ~64K ids (~256 KiB).
    max_ids = 64 * 1024
    tiles_per_chunk = max(1, max_ids // max(tile_s * B, 1))
    chunk_s = tiles_per_chunk * tile_s

    if resident:
        emb_spec = pl.BlockSpec((V, E), lambda i, tok: (0, 0))   # streamed into VMEM once
    else:
        emb_spec = pl.BlockSpec(memory_space=pl.ANY)             # stays in HBM; rows DMA'd

    est = vmem_est(tile_s, wave_s)
    vmem_limit = int(min(budget * 5 // 4, max(32 * 2**20, 2 * est)))

    outs = []
    for c0 in range(0, S, chunk_s):
        c_len = min(chunk_s, S - c0)
        c_pad = _round_up(c_len, tile_s)
        tok_c = jnp.pad(tokens[c0:c0 + c_len], ((0, c_pad - c_len), (0, 0)))   # pad id 0 (valid)
        pe_c = jnp.pad(pe_f32[c0:c0 + c_len], ((0, c_pad - c_len), (0, 0)))
        grid = (c_pad // tile_s,)

        out_c = pl.pallas_call(
            functools.partial(_gather_kernel, scale=scale, bsz=B, emb_e=E,
                              wave_s=wave_s, num_waves=num_waves, seq_len=c_len),
            out_shape=jax.ShapeDtypeStruct((c_pad, B * E), jnp.float32),
            grid_spec=pltpu.PrefetchScalarGridSpec(
                num_scalar_prefetch=1,
                grid=grid,
                in_specs=[
                    pl.BlockSpec((tile_s, E), lambda i, tok: (i, 0)),   # PE rows
                    emb_spec,                                           # embedding table
                ],
                out_specs=pl.BlockSpec((tile_s, B * E), lambda i, tok: (i, 0)),
                scratch_shapes=[
                    pltpu.VMEM((2, wave_s, B * E), jnp.float32),        # wave landing buffers
                    pltpu.SemaphoreType.DMA((2,)),
                ],
            ),
            compiler_params=pltpu.CompilerParams(
                dimension_semantics=("parallel",),
                vmem_limit_bytes=vmem_limit),
        )(tok_c.reshape(c_pad * B), pe_c, emb_f32)
        outs.append(out_c[:c_len])

    out = outs[0] if len(outs) == 1 else jnp.concatenate(outs, axis=0)
    return out.reshape(S, B, E)


def encoder_layer(tokens, emb_table, pe_table, *, tile_s=256, wave_s=32, path="auto"):
    """tokens (S, B) int -> (S, B, E) f32 == emb_table[tokens] * sqrt(E) + pe_table[:S, None, :]."""
    S, B = tokens.shape
    V, E = emb_table.shape
    if pe_table.shape[0] < S:
        raise ValueError(f"seq_len {S} exceeds positional-encoding max_len {pe_table.shape[0]}")
    if pe_table.shape[1] != E:
        raise ValueError("pe_table feature dim must match embedding size")

    scale = math.sqrt(float(E))
    # PyTorch nn.Embedding raises on out-of-range ids; we clamp so gathers can never go OOB.
    tokens = jnp.clip(tokens.astype(jnp.int32), 0, V - 1)
    emb_f32 = emb_table.astype(jnp.float32)
    pe_f32 = pe_table[:S].astype(jnp.float32)

    budget = int(_vmem_capacity_bytes() * 0.70)        # per-chip headroom (v7x: 64 MiB physical)
    table_bytes = 4 * _r8(V) * _r128(E)

    if path == "auto":
        if V <= 512:
            path = "onehot"
        elif 2 * table_bytes <= budget // 3:
            path = "resident"
        else:
            path = "hbm"

    if path == "onehot":
        return _encoder_onehot(tokens, emb_f32, pe_f32, scale, tile_s, budget)
    resident = (path == "resident") and (2 * table_bytes <= budget // 2)
    return _encoder_gather(tokens, emb_f32, pe_f32, scale, tile_s, wave_s, budget, resident)


if __name__ == "__main__":
    key = jax.random.PRNGKey(0)
    k = jax.random.split(key, 6)

    def reference(tok, emb, pe):
        E = emb.shape[1]
        return emb[tok].astype(jnp.float32) * math.sqrt(float(E)) + pe[:tok.shape[0], None, :]

    # Config A: tiny vocab -> one-hot MXU path (B*E = 128 so the output slab is lane-dense).
    S, B, V, E = 8, 4, 64, 32
    emb = jax.random.normal(k[0], (V, E), dtype=jnp.float32)
    pe = make_positional_encoding(16, E)
    tok = jax.random.randint(k[1], (S, B), 0, V, dtype=jnp.int32)
    out = jax.block_until_ready(encoder_layer(tok, emb, pe))
    assert out.shape == (S, B, E)
    assert jnp.allclose(out, reference(tok, emb, pe), atol=1e-5, rtol=1e-5), "one-hot path mismatch"

    # Config B: large vocab -> HBM DMA-gather path.  S=20 with tile_s=16 / wave_s=8 gives two grid
    # steps, two double-buffered waves per tile, and one all-padding wave (exercises the guards).
    S, B, V, E = 20, 2, 2048, 128
    emb = jax.random.normal(k[2], (V, E), dtype=jnp.float32)
    pe = make_positional_encoding(32, E)
    tok = jax.random.randint(k[3], (S, B), 0, V, dtype=jnp.int32)
    out = jax.block_until_ready(encoder_layer(tok, emb, pe, tile_s=16, wave_s=8, path="hbm"))
    assert out.shape == (S, B, E)
    assert jnp.allclose(out, reference(tok, emb, pe), atol=1e-5, rtol=1e-5), "hbm-gather path mismatch"

    # Config C: moderate vocab -> VMEM-resident gather path (table streamed into VMEM once, rows
    # gathered with on-chip DMAs); default tiles, grid split so both v7x TensorCores get work.
    S, B, V, E = 40, 2, 512, 256
    emb = jax.random.normal(k[4], (V, E), dtype=jnp.float32)
    pe = make_positional_encoding(64, E)
    tok = jax.random.randint(k[5], (S, B), 0, V, dtype=jnp.int32)
    out = jax.block_until_ready(encoder_layer(tok, emb, pe, path="resident"))
    assert out.shape == (S, B, E)
    assert jnp.allclose(out, reference(tok, emb, pe), atol=1e-5, rtol=1e-5), "resident path mismatch"

    print("KERNEL_OK")
</pallas_src>

<mosaic_0001>
module attributes {stable_mosaic.version = 11 : i64} {
  func.func @_onehot_kernel(%arg0: i32, %arg1: memref<8x4xi32, #tpu.memory_space<vmem>>, %arg2: memref<128x32xf32, #tpu.memory_space<vmem>>, %arg3: memref<8x32xf32, #tpu.memory_space<vmem>>, %arg4: memref<8x128xf32, #tpu.memory_space<vmem>>) attributes {dimension_semantics = [#tpu.dimension_semantics<parallel>], iteration_bounds = array<i64: 1>, scalar_prefetch = 0 : i64, scratch_operands = 0 : i64, tpu.core_type = #tpu.core_type<tc>, window_params = [{transform_indices = @transform_0, window_bounds = array<i64: 8, 4>}, {pipeline_mode = #tpu.pipeline_mode<synchronous>, transform_indices = @transform_1, window_bounds = array<i64: 128, 32>}, {transform_indices = @transform_2, window_bounds = array<i64: 8, 32>}, {transform_indices = @transform_3, window_bounds = array<i64: 8, 128>}]} {
    %c0 = arith.constant 0 : index
    %c0_0 = arith.constant 0 : index
    %0 = vector.load %arg2[%c0, %c0_0] : memref<128x32xf32, #tpu.memory_space<vmem>>, vector<128x32xf32>
    %c0_1 = arith.constant 0 : index
    %c0_2 = arith.constant 0 : index
    %1 = vector.load %arg3[%c0_1, %c0_2] : memref<8x32xf32, #tpu.memory_space<vmem>>, vector<8x32xf32>
    %2 = tpu.iota {dimensions = array<i32: 1>} : vector<8x128xi32>
    %c0_3 = arith.constant 0 : index
    %c0_4 = arith.constant 0 : index
    %3 = vector.load %arg1[%c0_3, %c0_4] : memref<8x4xi32, #tpu.memory_space<vmem>>, vector<8x1xi32>
    %4 = vector.broadcast %3 : vector<8x1xi32> to vector<8x128xi32>
    %5 = arith.cmpi eq, %2, %4 : vector<8x128xi32>
    %6 = arith.extui %5 : vector<8x128xi1> to vector<8x128xi32>
    %7 = arith.sitofp %6 : vector<8x128xi32> to vector<8x128xf32>
    %cst = arith.constant dense<0.000000e+00> : vector<8x32xf32>
    %8 = tpu.matmul %7, %0, %cst {dimension_numbers = #tpu.dot_dimension_numbers<[1], [0], [0], [1], [0, 0, 1, 1], [], []>} : vector<8x128xf32>, vector<128x32xf32>, vector<8x32xf32> -> vector<8x32xf32>
    %9 = arith.addf %8, %1 : vector<8x32xf32>
    %c0_5 = arith.constant 0 : index
    %c0_6 = arith.constant 0 : index
    %10 = vector.load %arg4[%c0_5, %c0_6] : memref<8x128xf32, #tpu.memory_space<vmem>>, vector<8x32xf32>
    tpu.vector_store %arg4[%c0_5, %c0_6], %9 {strides = array<i32>} : memref<8x128xf32, #tpu.memory_space<vmem>>, vector<8x32xf32>,
    %c0_7 = arith.constant 0 : index
    %c1 = arith.constant 1 : index
    %11 = vector.load %arg1[%c0_7, %c1] : memref<8x4xi32, #tpu.memory_space<vmem>>, vector<8x1xi32>
    %12 = vector.broadcast %11 : vector<8x1xi32> to vector<8x128xi32>
    %13 = arith.cmpi eq, %2, %12 : vector<8x128xi32>
    %14 = arith.extui %13 : vector<8x128xi1> to vector<8x128xi32>
    %15 = arith.sitofp %14 : vector<8x128xi32> to vector<8x128xf32>
    %cst_8 = arith.constant dense<0.000000e+00> : vector<8x32xf32>
    %16 = tpu.matmul %15, %0, %cst_8 {dimension_numbers = #tpu.dot_dimension_numbers<[1], [0], [0], [1], [0, 0, 1, 1], [], []>} : vector<8x128xf32>, vector<128x32xf32>, vector<8x32xf32> -> vector<8x32xf32>
    %17 = arith.addf %16, %1 : vector<8x32xf32>
    %c0_9 = arith.constant 0 : index
    %c32 = arith.constant 32 : index
    %18 = vector.load %arg4[%c0_9, %c32] : memref<8x128xf32, #tpu.memory_space<vmem>>, vector<8x32xf32>
    tpu.vector_store %arg4[%c0_9, %c32], %17 {strides = array<i32>} : memref<8x128xf32, #tpu.memory_space<vmem>>, vector<8x32xf32>,
    %c0_10 = arith.constant 0 : index
    %c2 = arith.constant 2 : index
    %19 = vector.load %arg1[%c0_10, %c2] : memref<8x4xi32, #tpu.memory_space<vmem>>, vector<8x1xi32>
    %20 = vector.broadcast %19 : vector<8x1xi32> to vector<8x128xi32>
    %21 = arith.cmpi eq, %2, %20 : vector<8x128xi32>
    %22 = arith.extui %21 : vector<8x128xi1> to vector<8x128xi32>
    %23 = arith.sitofp %22 : vector<8x128xi32> to vector<8x128xf32>
    %cst_11 = arith.constant dense<0.000000e+00> : vector<8x32xf32>
    %24 = tpu.matmul %23, %0, %cst_11 {dimension_numbers = #tpu.dot_dimension_numbers<[1], [0], [0], [1], [0, 0, 1, 1], [], []>} : vector<8x128xf32>, vector<128x32xf32>, vector<8x32xf32> -> vector<8x32xf32>
    %25 = arith.addf %24, %1 : vector<8x32xf32>
    %c0_12 = arith.constant 0 : index
    %c64 = arith.constant 64 : index
    %26 = vector.load %arg4[%c0_12, %c64] : memref<8x128xf32, #tpu.memory_space<vmem>>, vector<8x32xf32>
    tpu.vector_store %arg4[%c0_12, %c64], %25 {strides = array<i32>} : memref<8x128xf32, #tpu.memory_space<vmem>>, vector<8x32xf32>,
    %c0_13 = arith.constant 0 : index
    %c3 = arith.constant 3 : index
    %27 = vector.load %arg1[%c0_13, %c3] : memref<8x4xi32, #tpu.memory_space<vmem>>, vector<8x1xi32>
    %28 = vector.broadcast %27 : vector<8x1xi32> to vector<8x128xi32>
    %29 = arith.cmpi eq, %2, %28 : vector<8x128xi32>
    %30 = arith.extui %29 : vector<8x128xi1> to vector<8x128xi32>
    %31 = arith.sitofp %30 : vector<8x128xi32> to vector<8x128xf32>
    %cst_14 = arith.constant dense<0.000000e+00> : vector<8x32xf32>
    %32 = tpu.matmul %31, %0, %cst_14 {dimension_numbers = #tpu.dot_dimension_numbers<[1], [0], [0], [1], [0, 0, 1, 1], [], []>} : vector<8x128xf32>, vector<128x32xf32>, vector<8x32xf32> -> vector<8x32xf32>
    %33 = arith.addf %32, %1 : vector<8x32xf32>
    %c0_15 = arith.constant 0 : index
    %c96 = arith.constant 96 : index
    %34 = vector.load %arg4[%c0_15, %c96] : memref<8x128xf32, #tpu.memory_space<vmem>>, vector<8x32xf32>
    tpu.vector_store %arg4[%c0_15, %c96], %33 {strides = array<i32>} : memref<8x128xf32, #tpu.memory_space<vmem>>, vector<8x32xf32>,
    return
  }
  func.func @transform_0(%arg0: i32) -> (i32, i32) {
    %c0_i32 = arith.constant 0 : i32
    %c0_i32_0 = arith.constant 0 : i32
    return %arg0, %c0_i32 : i32, i32
  }
  func.func @transform_1(%arg0: i32) -> (i32, i32) {
    %c0_i32 = arith.constant 0 : i32
    %c0_i32_0 = arith.constant 0 : i32
    %c0_i32_1 = arith.constant 0 : i32
    return %c0_i32, %c0_i32_0 : i32, i32
  }
  func.func @transform_2(%arg0: i32) -> (i32, i32) {
    %c0_i32 = arith.constant 0 : i32
    %c0_i32_0 = arith.constant 0 : i32
    return %arg0, %c0_i32 : i32, i32
  }
  func.func @transform_3(%arg0: i32) -> (i32, i32) {
    %c0_i32 = arith.constant 0 : i32
    %c0_i32_0 = arith.constant 0 : i32
    return %arg0, %c0_i32 : i32, i32
  }
}

</mosaic_0001>

<llo_original>
// kernel: tpu_custom_call.1
$region0: #{tpu_custom_call.1}
  #allocation0 [shape = 'u32[]', space=smem, size = 0x4, offset = 0x4, fixed_abs, tag = 'smem constant byte address 0x4 - core index']
  #allocation1 [shape = 'u32[144,128]{1,0:T(1,128)}', space=vmem, size = 0x12000, scoped, tag = 'internal scratch']
  %s0 = inlined_call_operand.vmem [shape: s32[8,4], index: 0, kind: input, shape index: {}]
  %s1 = inlined_call_operand.vmem [shape: f32[128,32], index: 1, kind: input, shape index: {}]
  %s2 = inlined_call_operand.vmem [shape: f32[8,32], index: 2, kind: input, shape index: {}]
  %s3 = inlined_call_operand.hbm [shape: f32[8,128], index: 3, kind: output, shape index: {}]
  %s4 = sld [smem:[#allocation0]]
  $region22: #{tpu_custom_call.1} parent=0
    _
  %s6 = ssub.s32 1, %s4
  %s7 = scalar_select 0, %s6, %s4
  $region1: #{tpu_custom_call.1} parent=0
    #allocation2 [shape = 'u8[4096]{0}', space=vmem, size = 0x1000, scoped, tag = 'output window, operand 0, single buffered']
    #allocation3 [shape = 's32[1]{0}', space=sflag, size = 0x4, scoped, tag = 'scoped memory for tpu_custom_call.1']
    %8 = vsyncpa [#allocation3], 0
    // Predicated region
    $region2: #{tpu_custom_call.1} parent=1 // pred_check
      _
    $region3: #{tpu_custom_call.1} parent=1 // pred_check_branch
      %10 = sbr.rel (0) target = $region5
    $region4: #{tpu_custom_call.1} parent=1 // pred_region
      _
    $region5: #{tpu_custom_call.1} parent=1 // pred_fallthru
      _
    // Predicated region
    $region6: #{tpu_custom_call.1} parent=1 // pred_check
      _
    $region7: #{tpu_custom_call.1} parent=1 // pred_check_branch
      %12 = sbr.rel (0) target = $region9
    $region8: #{tpu_custom_call.1} parent=1 // pred_region
      _
    $region9: #{tpu_custom_call.1} parent=1 // pred_fallthru
      _
    // Predicated region
    $region10: #{tpu_custom_call.1} parent=1 // pred_check
      _
    $region11: #{tpu_custom_call.1} parent=1 // pred_check_branch
      %14 = sbr.rel (0) target = $region13
    $region12: #{tpu_custom_call.1} parent=1 // pred_region
      _
    $region13: #{tpu_custom_call.1} parent=1 // pred_fallthru
      _
    %v15 = vld [vmem:[%s1] sm:$0xff]
    %v16 = vld [vmem:[%s1 + $0x8] sm:$0xff]
    %v17 = vld [vmem:[%s1 + $0x10] sm:$0xff]
    %v18 = vld [vmem:[%s1 + $0x18] sm:$0xff]
    %v19 = vld [vmem:[%s1 + $0x20] sm:$0xff]
    %v20 = vld [vmem:[%s1 + $0x28] sm:$0xff]
    %v21 = vld [vmem:[%s1 + $0x30] sm:$0xff]
    %v22 = vld [vmem:[%s1 + $0x38] sm:$0xff]
    %v23 = vld [vmem:[%s1 + $0x40] sm:$0xff]
    %v24 = vld [vmem:[%s1 + $0x48] sm:$0xff]
    %v25 = vld [vmem:[%s1 + $0x50] sm:$0xff]
    %v26 = vld [vmem:[%s1 + $0x58] sm:$0xff]
    %v27 = vld [vmem:[%s1 + $0x60] sm:$0xff]
    %v28 = vld [vmem:[%s1 + $0x68] sm:$0xff]
    %v29 = vld [vmem:[%s1 + $0x70] sm:$0xff]
    %v30 = vld [vmem:[%s1 + $0x78] sm:$0xff]
    %v31 = vld [vmem:[%s2] sm:$0xff]
    %v32 = vlaneseq
    %v33 = vand.u32 %v32, 127
    %v34 = vld [vmem:[%s0] sm:$0xff]
    %35 = vset.pattern.permute.xlu0 0
    %36 = vperm.xlu0 %35, %v34
    %v37 = vpop.permute.xlu0 %36
    %vm38 = vcmp.eq.s32.totalorder %v33, %v37
    %v39 = vsel %vm38, 1, 0
    %v40 = vcvt.s32.f32 %v39
    %41 = vmatprep.subr.mxu0 0.0
    %42 = vmatpush1.msra.mxu0 %v30
    %43 = vmatprep.subr.mxu0 0.0
    %44 = vmatpush1.msra.mxu0 %v29
    %45 = vmatprep.subr.mxu0 0.0
    %46 = vmatpush1.msra.mxu0 %v28
    %47 = vmatprep.subr.mxu0 0.0
    %48 = vmatpush1.msra.mxu0 %v27
    %49 = vmatprep.subr.mxu0 0.0
    %50 = vmatpush1.msra.mxu0 %v26
    %51 = vmatprep.subr.mxu0 0.0
    %52 = vmatpush1.msra.mxu0 %v25
    %53 = vmatprep.subr.mxu0 0.0
    %54 = vmatpush1.msra.mxu0 %v24
    %55 = vmatprep.subr.mxu0 0.0
    %56 = vmatpush1.msra.mxu0 %v23
    %57 = vmatprep.subr.mxu0 0.0
    %58 = vmatpush1.msra.mxu0 %v22
    %59 = vmatprep.subr.mxu0 0.0
    %60 = vmatpush1.msra.mxu0 %v21
    %61 = vmatprep.subr.mxu0 0.0
    %62 = vmatpush1.msra.mxu0 %v20
    %63 = vmatprep.subr.mxu0 0.0
    %64 = vmatpush1.msra.mxu0 %v19
    %65 = vmatprep.subr.mxu0 0.0
    %66 = vmatpush1.msra.mxu0 %v18
    %67 = vmatprep.subr.mxu0 0.0
    %68 = vmatpush1.msra.mxu0 %v17
    %69 = vmatprep.subr.mxu0 0.0
    %70 = vmatpush1.msra.mxu0 %v16
    %71 = vmatprep.subr.mxu0 0.0
    %72 = vmatpush1.msra.mxu0 %v15
    %73 = vmatprep.subr.mxu0 0.0
    %74 = vmatpush2.msra.mxu0 0.0
    %75 = vmatprep.subr.mxu0 0.0
    %76 = vmatpush2.msra.mxu0 0.0
    %77 = vmatprep.subr.mxu0 0.0
    %78 = vmatpush2.msra.mxu0 0.0
    %79 = vmatprep.subr.mxu0 0.0
    %80 = vmatpush2.msra.mxu0 0.0
    %81 = vmatprep.subr.mxu0 0.0
    %82 = vmatpush2.msra.mxu0 0.0
    %83 = vmatprep.subr.mxu0 0.0
    %84 = vmatpush2.msra.mxu0 0.0
    %85 = vmatprep.subr.mxu0 0.0
    %86 = vmatpush2.msra.mxu0 0.0
    %87 = vmatprep.subr.mxu0 0.0
    %88 = vmatpush2.msra.mxu0 0.0
    %89 = vmatprep.subr.mxu0 0.0
    %90 = vmatpush2.msra.mxu0 0.0
    %91 = vmatprep.subr.mxu0 0.0
    %92 = vmatpush2.msra.mxu0 0.0
    %93 = vmatprep.subr.mxu0 0.0
    %94 = vmatpush2.msra.mxu0 0.0
    %95 = vmatprep.subr.mxu0 0.0
    %96 = vmatpush2.msra.mxu0 0.0
    %97 = vmatprep.subr.mxu0 0.0
    %98 = vmatpush2.msra.mxu0 0.0
    %99 = vmatprep.subr.mxu0 0.0
    %100 = vmatpush2.msra.mxu0 0.0
    %101 = vmatprep.subr.mxu0 0.0
    %102 = vmatpush2.msra.mxu0 0.0
    %103 = vmatprep.subr.mxu0 0.0
    %104 = vmatpush2.msra.mxu0 0.0
    %105 = vmatprep.mubr.f32.mxu0 0.0
    %106 = vmatmul.mubr.f32.gmra.mxu0 %v40
    %v107 = vpop.f32.mrf.mxu0
    %v108 = vadd.f32 %v31, %v107
    %v109 = vpop.f32.mrf.mxu0
    %110 = vdwg.mxu0
    %vm111 = vcmask 261120
    %112 = vst.msk [vmem:[#allocation2] sm:$0xff] %vm111, %v108
    %v113 = vld [vmem:[%s0] sm:$0xff]
    %114 = vset.pattern.permute.xlu0 1
    %115 = vperm.xlu0 %114, %v113
    %v116 = vpop.permute.xlu0 %115
    %vm117 = vcmp.eq.s32.totalorder %v33, %v116
    %v118 = vsel %vm117, 1, 0
    %v119 = vcvt.s32.f32 %v118
    %120 = vmatprep.subr.mxu0 0.0
    %121 = vmatpush1.msra.mxu0 %v30
    %122 = vmatprep.subr.mxu0 0.0
    %123 = vmatpush1.msra.mxu0 %v29
    %124 = vmatprep.subr.mxu0 0.0
    %125 = vmatpush1.msra.mxu0 %v28
    %126 = vmatprep.subr.mxu0 0.0
    %127 = vmatpush1.msra.mxu0 %v27
    %128 = vmatprep.subr.mxu0 0.0
    %129 = vmatpush1.msra.mxu0 %v26
    %130 = vmatprep.subr.mxu0 0.0
    %131 = vmatpush1.msra.mxu0 %v25
    %132 = vmatprep.subr.mxu0 0.0
    %133 = vmatpush1.msra.mxu0 %v24
    %134 = vmatprep.subr.mxu0 0.0
    %135 = vmatpush1.msra.mxu0 %v23
    %136 = vmatprep.subr.mxu0 0.0
    %137 = vmatpush1.msra.mxu0 %v22
    %138 = vmatprep.subr.mxu0 0.0
    %139 = vmatpush1.msra.mxu0 %v21
    %140 = vmatprep.subr.mxu0 0.0
    %141 = vmatpush1.msra.mxu0 %v20
    %142 = vmatprep.subr.mxu0 0.0
    %143 = vmatpush1.msra.mxu0 %v19
    %144 = vmatprep.subr.mxu0 0.0
    %145 = vmatpush1.msra.mxu0 %v18
    %146 = vmatprep.subr.mxu0 0.0
    %147 = vmatpush1.msra.mxu0 %v17
    %148 = vmatprep.subr.mxu0 0.0
    %149 = vmatpush1.msra.mxu0 %v16
    %150 = vmatprep.subr.mxu0 0.0
    %151 = vmatpush1.msra.mxu0 %v15
    %152 = vmatprep.subr.mxu0 0.0
    %153 = vmatpush2.msra.mxu0 0.0
    %154 = vmatprep.subr.mxu0 0.0
    %155 = vmatpush2.msra.mxu0 0.0
    %156 = vmatprep.subr.mxu0 0.0
    %157 = vmatpush2.msra.mxu0 0.0
    %158 = vmatprep.subr.mxu0 0.0
    %159 = vmatpush2.msra.mxu0 0.0
    %160 = vmatprep.subr.mxu0 0.0
    %161 = vmatpush2.msra.mxu0 0.0
    %162 = vmatprep.subr.mxu0 0.0
    %163 = vmatpush2.msra.mxu0 0.0
    %164 = vmatprep.subr.mxu0 0.0
    %165 = vmatpush2.msra.mxu0 0.0
    %166 = vmatprep.subr.mxu0 0.0
    %167 = vmatpush2.msra.mxu0 0.0
    %168 = vmatprep.subr.mxu0 0.0
    %169 = vmatpush2.msra.mxu0 0.0
    %170 = vmatprep.subr.mxu0 0.0
    %171 = vmatpush2.msra.mxu0 0.0
    %172 = vmatprep.subr.mxu0 0.0
    %173 = vmatpush2.msra.mxu0 0.0
    %174 = vmatprep.subr.mxu0 0.0
    %175 = vmatpush2.msra.mxu0 0.0
    %176 = vmatprep.subr.mxu0 0.0
    %177 = vmatpush2.msra.mxu0 0.0
    %178 = vmatprep.subr.mxu0 0.0
    %179 = vmatpush2.msra.mxu0 0.0
    %180 = vmatprep.subr.mxu0 0.0
    %181 = vmatpush2.msra.mxu0 0.0
    %182 = vmatprep.subr.mxu0 0.0
    %183 = vmatpush2.msra.mxu0 0.0
    %184 = vmatprep.mubr.f32.mxu0 0.0
    %185 = vmatmul.mubr.f32.gmra.mxu0 %v119
    %v186 = vpop.f32.mrf.mxu0
    %v187 = vadd.f32 %v31, %v186
    %v188 = vpop.f32.mrf.mxu0
    %189 = vdwg.mxu0
    %191 = vrot.lane.b32.xlu0 %v187, 32
    %v192 = vpop.permute.xlu0 %191
    %vm194 = vcmask 523520
    %195 = vst.msk [vmem:[#allocation2] sm:$0xff] %vm194, %v192
    %v196 = vld [vmem:[%s0] sm:$0xff]
    %197 = vset.pattern.permute.xlu0 2
    %198 = vperm.xlu0 %197, %v196
    %v199 = vpop.permute.xlu0 %198
    %vm200 = vcmp.eq.s32.totalorder %v33, %v199
    %v201 = vsel %vm200, 1, 0
    %v202 = vcvt.s32.f32 %v201
    %203 = vmatprep.subr.mxu0 0.0
    %204 = vmatpush1.msra.mxu0 %v30
    %205 = vmatprep.subr.mxu0 0.0
    %206 = vmatpush1.msra.mxu0 %v29
    %207 = vmatprep.subr.mxu0 0.0
    %208 = vmatpush1.msra.mxu0 %v28
    %209 = vmatprep.subr.mxu0 0.0
    %210 = vmatpush1.msra.mxu0 %v27
    %211 = vmatprep.subr.mxu0 0.0
    %212 = vmatpush1.msra.mxu0 %v26
    %213 = vmatprep.subr.mxu0 0.0
    %214 = vmatpush1.msra.mxu0 %v25
    %215 = vmatprep.subr.mxu0 0.0
    %216 = vmatpush1.msra.mxu0 %v24
    %217 = vmatprep.subr.mxu0 0.0
    %218 = vmatpush1.msra.mxu0 %v23
    %219 = vmatprep.subr.mxu0 0.0
    %220 = vmatpush1.msra.mxu0 %v22
    %221 = vmatprep.subr.mxu0 0.0
    %222 = vmatpush1.msra.mxu0 %v21
    %223 = vmatprep.subr.mxu0 0.0
    %224 = vmatpush1.msra.mxu0 %v20
    %225 = vmatprep.subr.mxu0 0.0
    %226 = vmatpush1.msra.mxu0 %v19
    %227 = vmatprep.subr.mxu0 0.0
    %228 = vmatpush1.msra.mxu0 %v18
    %229 = vmatprep.subr.mxu0 0.0
    %230 = vmatpush1.msra.mxu0 %v17
    %231 = vmatprep.subr.mxu0 0.0
    %232 = vmatpush1.msra.mxu0 %v16
    %233 = vmatprep.subr.mxu0 0.0
    %234 = vmatpush1.msra.mxu0 %v15
    %235 = vmatprep.subr.mxu0 0.0
    %236 = vmatpush2.msra.mxu0 0.0
    %237 = vmatprep.subr.mxu0 0.0
    %238 = vmatpush2.msra.mxu0 0.0
    %239 = vmatprep.subr.mxu0 0.0
    %240 = vmatpush2.msra.mxu0 0.0
    %241 = vmatprep.subr.mxu0 0.0
    %242 = vmatpush2.msra.mxu0 0.0
    %243 = vmatprep.subr.mxu0 0.0
    %244 = vmatpush2.msra.mxu0 0.0
    %245 = vmatprep.subr.mxu0 0.0
    %246 = vmatpush2.msra.mxu0 0.0
    %247 = vmatprep.subr.mxu0 0.0
    %248 = vmatpush2.msra.mxu0 0.0
    %249 = vmatprep.subr.mxu0 0.0
    %250 = vmatpush2.msra.mxu0 0.0
    %251 = vmatprep.subr.mxu0 0.0
    %252 = vmatpush2.msra.mxu0 0.0
    %253 = vmatprep.subr.mxu0 0.0
    %254 = vmatpush2.msra.mxu0 0.0
    %255 = vmatprep.subr.mxu0 0.0
    %256 = vmatpush2.msra.mxu0 0.0
    %257 = vmatprep.subr.mxu0 0.0
    %258 = vmatpush2.msra.mxu0 0.0
    %259 = vmatprep.subr.mxu0 0.0
    %260 = vmatpush2.msra.mxu0 0.0
    %261 = vmatprep.subr.mxu0 0.0
    %262 = vmatpush2.msra.mxu0 0.0
    %263 = vmatprep.subr.mxu0 0.0
    %264 = vmatpush2.msra.mxu0 0.0
    %265 = vmatprep.subr.mxu0 0.0
    %266 = vmatpush2.msra.mxu0 0.0
    %267 = vmatprep.mubr.f32.mxu0 0.0
    %268 = vmatmul.mubr.f32.gmra.mxu0 %v202
    %v269 = vpop.f32.mrf.mxu0
    %v270 = vadd.f32 %v31, %v269
    %v271 = vpop.f32.mrf.mxu0
    %272 = vdwg.mxu0
    %274 = vrot.lane.b32.xlu0 %v270, 64
    %v275 = vpop.permute.xlu0 %274
    %vm277 = vcmask 785920
    %278 = vst.msk [vmem:[#allocation2] sm:$0xff] %vm277, %v275
    %v279 = vld [vmem:[%s0] sm:$0xff]
    %280 = vset.pattern.permute.xlu0 3
    %281 = vperm.xlu0 %280, %v279
    %v282 = vpop.permute.xlu0 %281
    %vm283 = vcmp.eq.s32.totalorder %v33, %v282
    %v284 = vsel %vm283, 1, 0
    %v285 = vcvt.s32.f32 %v284
    %286 = vmatprep.subr.mxu0 0.0
    %287 = vmatpush1.msra.mxu0 %v30
    %288 = vmatprep.subr.mxu0 0.0
    %289 = vmatpush1.msra.mxu0 %v29
    %290 = vmatprep.subr.mxu0 0.0
    %291 = vmatpush1.msra.mxu0 %v28
    %292 = vmatprep.subr.mxu0 0.0
    %293 = vmatpush1.msra.mxu0 %v27
    %294 = vmatprep.subr.mxu0 0.0
    %295 = vmatpush1.msra.mxu0 %v26
    %296 = vmatprep.subr.mxu0 0.0
    %297 = vmatpush1.msra.mxu0 %v25
    %298 = vmatprep.subr.mxu0 0.0
    %299 = vmatpush1.msra.mxu0 %v24
    %300 = vmatprep.subr.mxu0 0.0
    %301 = vmatpush1.msra.mxu0 %v23
    %302 = vmatprep.subr.mxu0 0.0
    %303 = vmatpush1.msra.mxu0 %v22
    %304 = vmatprep.subr.mxu0 0.0
    %305 = vmatpush1.msra.mxu0 %v21
    %306 = vmatprep.subr.mxu0 0.0
    %307 = vmatpush1.msra.mxu0 %v20
    %308 = vmatprep.subr.mxu0 0.0
    %309 = vmatpush1.msra.mxu0 %v19
    %310 = vmatprep.subr.mxu0 0.0
    %311 = vmatpush1.msra.mxu0 %v18
    %312 = vmatprep.subr.mxu0 0.0
    %313 = vmatpush1.msra.mxu0 %v17
    %314 = vmatprep.subr.mxu0 0.0
    %315 = vmatpush1.msra.mxu0 %v16
    %316 = vmatprep.subr.mxu0 0.0
    %317 = vmatpush1.msra.mxu0 %v15
    %318 = vmatprep.subr.mxu0 0.0
    %319 = vmatpush2.msra.mxu0 0.0
    %320 = vmatprep.subr.mxu0 0.0
    %321 = vmatpush2.msra.mxu0 0.0
    %322 = vmatprep.subr.mxu0 0.0
    %323 = vmatpush2.msra.mxu0 0.0
    %324 = vmatprep.subr.mxu0 0.0
    %325 = vmatpush2.msra.mxu0 0.0
    %326 = vmatprep.subr.mxu0 0.0
    %327 = vmatpush2.msra.mxu0 0.0
    %328 = vmatprep.subr.mxu0 0.0
    %329 = vmatpush2.msra.mxu0 0.0
    %330 = vmatprep.subr.mxu0 0.0
    %331 = vmatpush2.msra.mxu0 0.0
    %332 = vmatprep.subr.mxu0 0.0
    %333 = vmatpush2.msra.mxu0 0.0
    %334 = vmatprep.subr.mxu0 0.0
    %335 = vmatpush2.msra.mxu0 0.0
    %336 = vmatprep.subr.mxu0 0.0
    %337 = vmatpush2.msra.mxu0 0.0
    %338 = vmatprep.subr.mxu0 0.0
    %339 = vmatpush2.msra.mxu0 0.0
    %340 = vmatprep.subr.mxu0 0.0
    %341 = vmatpush2.msra.mxu0 0.0
    %342 = vmatprep.subr.mxu0 0.0
    %343 = vmatpush2.msra.mxu0 0.0
    %344 = vmatprep.subr.mxu0 0.0
    %345 = vmatpush2.msra.mxu0 0.0
    %346 = vmatprep.subr.mxu0 0.0
    %347 = vmatpush2.msra.mxu0 0.0
    %348 = vmatprep.subr.mxu0 0.0
    %349 = vmatpush2.msra.mxu0 0.0
    %350 = vmatprep.mubr.f32.mxu0 0.0
    %351 = vmatmul.mubr.f32.gmra.mxu0 %v285
    %v352 = vpop.f32.mrf.mxu0
    %v353 = vadd.f32 %v31, %v352
    %v354 = vpop.f32.mrf.mxu0
    %355 = vdwg.mxu0
    %357 = vrot.lane.b32.xlu0 %v353, 96
    %v358 = vpop.permute.xlu0 %357
    %vm360 = vcmask 1048320
    %361 = vst.msk [vmem:[#allocation2] sm:$0xff] %vm360, %v358
    // Predicated region
    $region14: #{tpu_custom_call.1} parent=1 // pred_check
      _
    $region15: #{tpu_custom_call.1} parent=1 // pred_check_branch
      %363 = sbr.rel (0) target = $region17
    $region16: #{tpu_custom_call.1} parent=1 // pred_region
      %s365 = ssub.s32 128, 128
      %366 = vsyncadd [#allocation3], %s365
      %s368 = sshll.u32 [#allocation2], 4
      %s369 = int_to_ptr.vmem [resolvable:$true] %s368
      %371 = dma.vmem_to_hbm [thread:$0]  %s369, 128, %s3, [#allocation3]
    $region17: #{tpu_custom_call.1} parent=1 // pred_fallthru
      _
    // Predicated region
    $region18: #{tpu_custom_call.1} parent=1 // pred_check
      _
    $region19: #{tpu_custom_call.1} parent=1 // pred_check_branch
      %373 = sbr.rel (0) target = $region21
    $region20: #{tpu_custom_call.1} parent=1 // pred_region
      %374 = dma.done [#allocation3], 128
    $region21: #{tpu_custom_call.1} parent=1 // pred_fallthru
      _
    %375 = vsyncpa [#allocation3], 1

</llo_original>
